<compile_context>
chip_gen: v6e
topology: v6e:2x2x1
jax: 0.10.0
libtpu: 0.0.40
codegen_flags: <defaults>
</compile_context>

<pallas_src>
import functools
import math

import jax
import jax.numpy as jnp
from jax.experimental import pallas as pl
from jax.experimental.pallas import tpu as pltpu

OMEGA = 10.0
EPSILON = 2.0
# C = omega - omega * log(1 + omega / epsilon)   (compile-time Python constant)
C_CONST = float(OMEGA - OMEGA * math.log(1.0 + OMEGA / EPSILON))

LANES = 128
TILE_ROWS_MAX = 2048   # 2048 x 128 x 4B = 1 MiB f32 per input buffer
NUM_SPLITS_MAX = 2     # leading "parallel" axis -> up to 2 TensorCores on v7x


def _round_up(x, m):
    return ((x + m - 1) // m) * m


def _wing_loss_kernel(pred_ref, targ_ref, out_ref, *,
                      tile_rows, tiles_per_split, total_rows, needs_mask):
    c = pl.program_id(0)   # split (core) index      -- "parallel"
    i = pl.program_id(1)   # row-tile within split   -- "arbitrary" (reduction)

    p = pred_ref[...].astype(jnp.float32)
    t = targ_ref[...].astype(jnp.float32)
    diff = jnp.abs(p - t)

    # Wing loss: omega*log(1 + diff/eps) if diff < omega else diff - C
    loss = jnp.where(
        diff < OMEGA,
        OMEGA * jnp.log1p(diff * (1.0 / EPSILON)),
        diff - C_CONST,
    )

    if needs_mask:
        # Zero out rows past the real data (partial / duplicated edge tiles).
        base = (c * tiles_per_split + i) * tile_rows
        row_ids = base + jax.lax.broadcasted_iota(jnp.int32, (tile_rows, LANES), 0)
        loss = jnp.where(row_ids < total_rows, loss, 0.0)

    # Fold the (tile_rows, 128) tile into an (8, 128) partial sum using only
    # vreg-wise adds (no cross-lane movement).
    partial = loss.reshape(tile_rows // 8, 8, LANES).sum(axis=0)

    @pl.when(i == 0)
    def _():
        out_ref[...] = jnp.zeros_like(out_ref)

    out_ref[...] += partial[None, :, :]


def wing_loss(pred, target):
    """Pallas implementation of WingLoss(omega=10, epsilon=2).forward(pred, target)."""
    assert pred.shape == target.shape
    if target.dtype != pred.dtype:
        target = target.astype(pred.dtype)

    n_elems = pred.size
    p = pred.reshape(-1)
    t = target.reshape(-1)

    # Only pad (with zeros -> zero loss contribution) when the flat length is
    # not already a multiple of the 128-lane width.
    n = p.shape[0]
    if n % LANES != 0:
        pad = LANES - (n % LANES)
        p = jnp.pad(p, (0, pad))
        t = jnp.pad(t, (0, pad))

    rows = p.shape[0] // LANES
    p2 = p.reshape(rows, LANES)
    t2 = t.reshape(rows, LANES)

    # Sublane alignment: 8 for 4-byte dtypes, 16 for 2-byte, 32 for 1-byte.
    itemsize = jnp.dtype(p2.dtype).itemsize
    align = 8 * max(1, 4 // itemsize)

    tile_rows = min(TILE_ROWS_MAX, _round_up(rows, align))
    num_tiles = (rows + tile_rows - 1) // tile_rows
    num_splits = NUM_SPLITS_MAX if num_tiles >= NUM_SPLITS_MAX else 1
    tiles_per_split = (num_tiles + num_splits - 1) // num_splits
    needs_mask = (num_splits * tiles_per_split * tile_rows) != rows

    last_tile = num_tiles - 1
    if num_splits * tiles_per_split == num_tiles:
        def row_map(c, i):
            return (c * tiles_per_split + i, 0)
    else:
        # Clamp possible overshoot tile (its rows are masked out in-kernel).
        def row_map(c, i):
            return (jnp.minimum(c * tiles_per_split + i, last_tile), 0)

    kernel = functools.partial(
        _wing_loss_kernel,
        tile_rows=tile_rows,
        tiles_per_split=tiles_per_split,
        total_rows=rows,
        needs_mask=needs_mask,
    )

    partials = pl.pallas_call(
        kernel,
        out_shape=jax.ShapeDtypeStruct((num_splits, 8, LANES), jnp.float32),
        grid_spec=pltpu.PrefetchScalarGridSpec(
            num_scalar_prefetch=0,
            grid=(num_splits, tiles_per_split),
            in_specs=[
                pl.BlockSpec((tile_rows, LANES), row_map),
                pl.BlockSpec((tile_rows, LANES), row_map),
            ],
            out_specs=pl.BlockSpec((1, 8, LANES), lambda c, i: (c, 0, 0)),
        ),
        compiler_params=pltpu.CompilerParams(
            dimension_semantics=("parallel", "arbitrary"),
        ),
    )(p2, t2)

    # Single tiny cross-lane reduction outside the kernel, then the mean.
    return jnp.sum(partials) / jnp.float32(n_elems)


def wing_loss_reference(pred, target):
    diff = jnp.abs(pred.astype(jnp.float32) - target.astype(jnp.float32))
    mask = (diff < OMEGA).astype(jnp.float32)
    loss = mask * OMEGA * jnp.log(1.0 + diff / EPSILON) + (1.0 - mask) * (diff - C_CONST)
    return jnp.mean(loss)


if __name__ == "__main__":
    key = jax.random.PRNGKey(0)
    k1, k2 = jax.random.split(key)
    # Small shape consistent with landmark-regression usage: (B, C, H, W)
    shape = (2, 4, 16, 16)
    pred = jax.random.normal(k1, shape, dtype=jnp.float32) * 8.0
    target = jax.random.normal(k2, shape, dtype=jnp.float32) * 8.0

    out = wing_loss(pred, target)
    out = jax.block_until_ready(out)

    ref = wing_loss_reference(pred, target)
    assert jnp.allclose(out, ref, rtol=1e-5, atol=1e-5), (out, ref)
    print("KERNEL_OK")
</pallas_src>

<mosaic_0001>
module attributes {stable_mosaic.version = 11 : i64} {
  func.func @_wing_loss_kernel(%arg0: i32, %arg1: i32, %arg2: memref<16x128xf32, #tpu.memory_space<vmem>>, %arg3: memref<16x128xf32, #tpu.memory_space<vmem>>, %arg4: memref<1x8x128xf32, #tpu.memory_space<vmem>>) attributes {dimension_semantics = [#tpu.dimension_semantics<parallel>, #tpu.dimension_semantics<arbitrary>], iteration_bounds = array<i64: 1, 1>, scalar_prefetch = 0 : i64, scratch_operands = 0 : i64, tpu.core_type = #tpu.core_type<tc>, window_params = [{transform_indices = @transform_0, window_bounds = array<i64: 16, 128>}, {transform_indices = @transform_1, window_bounds = array<i64: 16, 128>}, {transform_indices = @transform_2, window_bounds = array<i64: 1, 8, 128>}]} {
    %c0 = arith.constant 0 : index
    %c0_0 = arith.constant 0 : index
    %0 = vector.load %arg2[%c0, %c0_0] : memref<16x128xf32, #tpu.memory_space<vmem>>, vector<16x128xf32>
    %c0_1 = arith.constant 0 : index
    %c0_2 = arith.constant 0 : index
    %1 = vector.load %arg3[%c0_1, %c0_2] : memref<16x128xf32, #tpu.memory_space<vmem>>, vector<16x128xf32>
    %2 = arith.subf %0, %1 : vector<16x128xf32>
    %3 = math.absf %2 : vector<16x128xf32>
    %cst = arith.constant 1.000000e+01 : f32
    %4 = vector.broadcast %cst : f32 to vector<16x128xf32>
    %5 = arith.cmpf olt, %3, %4 : vector<16x128xf32>
    %cst_3 = arith.constant 5.000000e-01 : f32
    %6 = vector.broadcast %cst_3 : f32 to vector<16x128xf32>
    %7 = arith.mulf %3, %6 : vector<16x128xf32>
    %8 = math.log1p %7 : vector<16x128xf32>
    %cst_4 = arith.constant 1.000000e+01 : f32
    %9 = vector.broadcast %cst_4 : f32 to vector<16x128xf32>
    %10 = arith.mulf %9, %8 : vector<16x128xf32>
    %cst_5 = arith.constant -7.9175949 : f32
    %11 = vector.broadcast %cst_5 : f32 to vector<16x128xf32>
    %12 = arith.subf %3, %11 : vector<16x128xf32>
    %13 = arith.select %5, %10, %12 : vector<16x128xi1>, vector<16x128xf32>
    %14 = vector.shape_cast %13 : vector<16x128xf32> to vector<2x8x128xf32>
    %cst_6 = arith.constant dense<0.000000e+00> : vector<8x128xf32>
    %15 = vector.multi_reduction <add>, %14, %cst_6 [0] : vector<2x8x128xf32> to vector<8x128xf32>
    %c0_i32 = arith.constant 0 : i32
    %16 = arith.cmpi eq, %arg1, %c0_i32 : i32
    %17 = arith.extui %16 : i1 to i32
    %c0_i32_7 = arith.constant 0 : i32
    %18 = arith.cmpi ne, %17, %c0_i32_7 : i32
    scf.if %18 {
      %cst_14 = arith.constant 0.000000e+00 : f32
      %23 = vector.broadcast %cst_14 : f32 to vector<1x8x128xf32>
      %c0_15 = arith.constant 0 : index
      %c0_16 = arith.constant 0 : index
      %c0_17 = arith.constant 0 : index
      %24 = vector.load %arg4[%c0_15, %c0_16, %c0_17] : memref<1x8x128xf32, #tpu.memory_space<vmem>>, vector<1x8x128xf32>
      tpu.vector_store %arg4[%c0_15, %c0_16, %c0_17], %23 {strides = array<i32>} : memref<1x8x128xf32, #tpu.memory_space<vmem>>, vector<1x8x128xf32>,
    } else {
    }
    %c0_8 = arith.constant 0 : index
    %c0_9 = arith.constant 0 : index
    %c0_10 = arith.constant 0 : index
    %19 = vector.load %arg4[%c0_8, %c0_9, %c0_10] : memref<1x8x128xf32, #tpu.memory_space<vmem>>, vector<1x8x128xf32>
    %20 = vector.shape_cast %15 : vector<8x128xf32> to vector<1x8x128xf32>
    %21 = arith.addf %19, %20 : vector<1x8x128xf32>
    %c0_11 = arith.constant 0 : index
    %c0_12 = arith.constant 0 : index
    %c0_13 = arith.constant 0 : index
    %22 = vector.load %arg4[%c0_11, %c0_12, %c0_13] : memref<1x8x128xf32, #tpu.memory_space<vmem>>, vector<1x8x128xf32>
    tpu.vector_store %arg4[%c0_11, %c0_12, %c0_13], %21 {strides = array<i32>} : memref<1x8x128xf32, #tpu.memory_space<vmem>>, vector<1x8x128xf32>,
    return
  }
  func.func @transform_0(%arg0: i32, %arg1: i32) -> (i32, i32) {
    %c1_i32 = arith.constant 1 : i32
    %0 = arith.muli %arg0, %c1_i32 : i32
    %1 = arith.addi %0, %arg1 : i32
    %c0_i32 = arith.constant 0 : i32
    %c0_i32_0 = arith.constant 0 : i32
    return %1, %c0_i32 : i32, i32
  }
  func.func @transform_1(%arg0: i32, %arg1: i32) -> (i32, i32) {
    %c1_i32 = arith.constant 1 : i32
    %0 = arith.muli %arg0, %c1_i32 : i32
    %1 = arith.addi %0, %arg1 : i32
    %c0_i32 = arith.constant 0 : i32
    %c0_i32_0 = arith.constant 0 : i32
    return %1, %c0_i32 : i32, i32
  }
  func.func @transform_2(%arg0: i32, %arg1: i32) -> (i32, i32, i32) {
    %c0_i32 = arith.constant 0 : i32
    %c0_i32_0 = arith.constant 0 : i32
    %c0_i32_1 = arith.constant 0 : i32
    return %arg0, %c0_i32, %c0_i32_0 : i32, i32, i32
  }
}

</mosaic_0001>

<llo_original>
// kernel: tpu_custom_call.1
$region0: #{tpu_custom_call.1}
  #allocation0 [shape = 'u32[]', space=smem, size = 0x4, offset = 0x4, fixed_abs, tag = 'smem constant byte address 0x4 - core index']
  #allocation1 [shape = 'u32[144,128]{1,0:T(1,128)}', space=vmem, size = 0x12000, scoped, tag = 'internal scratch']
  %s0 = inlined_call_operand.hbm [shape: f32[16,128], index: 0, kind: input, shape index: {}]
  %s1 = inlined_call_operand.hbm [shape: f32[16,128], index: 1, kind: input, shape index: {}]
  %s2 = inlined_call_operand.hbm [shape: f32[1,8,128], index: 2, kind: output, shape index: {}]
  %s3 = sld [smem:[#allocation0]]
  $region30: #{tpu_custom_call.1} parent=0
    _
  %s5 = ssub.s32 1, %s3
  %s6 = scalar_select 0, %s5, %s3
  $region1: #{tpu_custom_call.1} parent=0
    #allocation2 [shape = 'u8[8192]{0}', space=vmem, size = 0x2000, scoped, tag = 'input window, operand 0, single buffered']
    #allocation3 [shape = 's32[1]{0}', space=sflag, size = 0x4, scoped, tag = 'scoped memory for tpu_custom_call.1']
    #allocation4 [shape = 's32[1]{0}', space=sflag, size = 0x4, scoped, tag = 'scoped memory for tpu_custom_call.1']
    #allocation5 [shape = 'u8[8192]{0}', space=vmem, size = 0x2000, scoped, tag = 'input window, operand 1, single buffered']
    #allocation6 [shape = 's32[1]{0}', space=sflag, size = 0x4, scoped, tag = 'scoped memory for tpu_custom_call.1']
    #allocation7 [shape = 'u8[4096]{0}', space=vmem, size = 0x1000, scoped, tag = 'output window, operand 0, single buffered']
    %7 = vsyncpa [#allocation3], 0
    %8 = vsyncpa [#allocation6], 0
    %9 = vsyncpa [#allocation4], 0
    // Predicated region
    $region2: #{tpu_custom_call.1} parent=1 // pred_check
      _
    $region3: #{tpu_custom_call.1} parent=1 // pred_check_branch
      %11 = sbr.rel (0) target = $region5
    $region4: #{tpu_custom_call.1} parent=1 // pred_region
      %s12 = sadd.s32 0, 0
      %s13 = smul.u32 2, %s12
      %s15 = ssub.s32 256, 256
      %16 = vsyncadd [#allocation3], %s15
      %s17 = smul.addr %s13, 128
      %s18 = scalar_lea.hbm %s0, %s17
      %s19 = sshll.u32 [#allocation2], 4
      %s20 = int_to_ptr.vmem [resolvable:$true] %s19
      %25 = dma.hbm_to_vmem [thread:$0]  %s18, 256, %s20, [#allocation3], 128, 128, 8
    $region5: #{tpu_custom_call.1} parent=1 // pred_fallthru
      _
    // Predicated region
    $region6: #{tpu_custom_call.1} parent=1 // pred_check
      _
    $region7: #{tpu_custom_call.1} parent=1 // pred_check_branch
      %27 = sbr.rel (0) target = $region9
    $region8: #{tpu_custom_call.1} parent=1 // pred_region
      %s28 = sadd.s32 0, 0
      %s29 = smul.u32 2, %s28
      %s31 = ssub.s32 256, 256
      %32 = vsyncadd [#allocation6], %s31
      %s33 = smul.addr %s29, 128
      %s34 = scalar_lea.hbm %s1, %s33
      %s35 = sshll.u32 [#allocation5], 4
      %s36 = int_to_ptr.vmem [resolvable:$true] %s35
      %41 = dma.hbm_to_vmem [thread:$0]  %s34, 256, %s36, [#allocation6], 128, 128, 8
    $region9: #{tpu_custom_call.1} parent=1 // pred_fallthru
      _
    // Predicated region
    $region10: #{tpu_custom_call.1} parent=1 // pred_check
      _
    $region11: #{tpu_custom_call.1} parent=1 // pred_check_branch
      %43 = sbr.rel (0) target = $region13
    $region12: #{tpu_custom_call.1} parent=1 // pred_region
      %44 = dma.done [#allocation3], 256
    $region13: #{tpu_custom_call.1} parent=1 // pred_fallthru
      _
    // Predicated region
    $region14: #{tpu_custom_call.1} parent=1 // pred_check
      _
    $region15: #{tpu_custom_call.1} parent=1 // pred_check_branch
      %46 = sbr.rel (0) target = $region17
    $region16: #{tpu_custom_call.1} parent=1 // pred_region
      %47 = dma.done [#allocation6], 256
    $region17: #{tpu_custom_call.1} parent=1 // pred_fallthru
      _
    %s48 = sadd.s32 0, 0
    %s49 = smul.u32 2, %s48
    %s50 = sadd.s32 0, 0
    %s51 = smul.u32 2, %s50
    %v52 = vld [vmem:[#allocation2] sm:$0xff]
    %v53 = vld [vmem:[#allocation2 + $0x8] sm:$0xff]
    %v54 = vld [vmem:[#allocation5] sm:$0xff]
    %v55 = vld [vmem:[#allocation5 + $0x8] sm:$0xff]
    %v56 = vsub.f32 %v52, %v54
    %v57 = vsub.f32 %v53, %v55
    %v58 = vand.u32 2147483647, %v56
    %v59 = vand.u32 2147483647, %v57
    %vm60 = vcmp.lt.f32.partialorder %v58, 10.0
    %vm61 = vcmp.lt.f32.partialorder %v59, 10.0
    %v62 = vmul.f32 %v58, 0.5
    %v63 = vmul.f32 %v59, 0.5
    %v64 = vadd.f32 %v62, 1.0
    %v65 = vlog2.pop %v64
    %v66 = vmul.f32 %v65, 0.6931472
    %v67 = vmul.f32 -0.5, %v62
    %v68 = vadd.f32 %v67, 1.0
    %v69 = vmul.f32 %v68, %v62
    %v70 = vand.u32 2147483647, %v62
    %vm71 = vcmp.lt.f32.partialorder %v70, 0.0004427343
    %v72 = vsel %vm71, %v69, %v66
    %v73 = vadd.f32 %v63, 1.0
    %v74 = vlog2.pop %v73
    %v75 = vmul.f32 %v74, 0.6931472
    %v76 = vmul.f32 -0.5, %v63
    %v77 = vadd.f32 %v76, 1.0
    %v78 = vmul.f32 %v77, %v63
    %v79 = vand.u32 2147483647, %v63
    %vm80 = vcmp.lt.f32.partialorder %v79, 0.0004427343
    %v81 = vsel %vm80, %v78, %v75
    %v82 = vmul.f32 %v72, 10.0
    %v83 = vmul.f32 %v81, 10.0
    %v84 = vsub.f32 %v58, -7.917595
    %v85 = vsub.f32 %v59, -7.917595
    %v86 = vsel %vm60, %v82, %v84
    %v87 = vsel %vm61, %v83, %v85
    %v88 = vadd.f32 %v86, %v87
    %p89 = scmp.eq.s32.totalorder 0, 0
    // Predicated region
    $region18: #{tpu_custom_call.1} parent=1 // pred_check
      %p90 = pneg %p89
    $region19: #{tpu_custom_call.1} parent=1 // pred_check_branch
      %92 = sbr.rel (%p90) target = $region21
    $region20: #{tpu_custom_call.1} parent=1 // pred_region
      %93 = vst [vmem:[#allocation7] sm:$0xff] 0.0
    $region21: #{tpu_custom_call.1} parent=1 // pred_fallthru
      _
    %v94 = vld [vmem:[#allocation7] sm:$0xff]
    %v95 = vadd.f32 %v94, %v88
    %96 = vst [vmem:[#allocation7] sm:$0xff] %v95
    // Predicated region
    $region22: #{tpu_custom_call.1} parent=1 // pred_check
      _
    $region23: #{tpu_custom_call.1} parent=1 // pred_check_branch
      %98 = sbr.rel (0) target = $region25
    $region24: #{tpu_custom_call.1} parent=1 // pred_region
      %s100 = ssub.s32 128, 128
      %101 = vsyncadd [#allocation4], %s100
      %s103 = sshll.u32 [#allocation7], 4
      %s104 = int_to_ptr.vmem [resolvable:$true] %s103
      %106 = dma.vmem_to_hbm [thread:$0]  %s104, 128, %s2, [#allocation4]
    $region25: #{tpu_custom_call.1} parent=1 // pred_fallthru
      _
    // Predicated region
    $region26: #{tpu_custom_call.1} parent=1 // pred_check
      _
    $region27: #{tpu_custom_call.1} parent=1 // pred_check_branch
      %108 = sbr.rel (0) target = $region29
    $region28: #{tpu_custom_call.1} parent=1 // pred_region
      %109 = dma.done [#allocation4], 128
    $region29: #{tpu_custom_call.1} parent=1 // pred_fallthru
      _
    %110 = vsyncpa [#allocation3], 1
    %111 = vsyncpa [#allocation6], 1
    %112 = vsyncpa [#allocation4], 1

</llo_original>
